<compile_context>
chip_gen: v6e
topology: v6e:2x2x1
jax: 0.10.0
libtpu: 0.0.40
codegen_flags: <defaults>
</compile_context>

<pallas_src>
import functools

import jax
import jax.numpy as jnp
from jax.experimental import pallas as pl
from jax.experimental.pallas import tpu as pltpu

INPUT_DIM = 30
HIDDEN_DIMS = [128, 64, 32]
OUTPUT_DIM = 2
LANE = 128          # pad hidden fan-outs/fan-ins to a full lane width
ROW_ALIGN = 256     # batch rows are padded/tiled in multiples of 256


def _round_up(n, m):
    return (n + m - 1) // m * m


def _mlp_kernel(x_ref, w1_ref, b1_ref, w2_ref, b2_ref, w3_ref, b3_ref,
                w4_ref, b4_ref, o_ref):
    """Fused 4-layer MLP for one batch tile: relu(relu(relu(xW1+b1)W2+b2)W3+b3)W4+b4."""
    cdt = w1_ref.dtype  # compute dtype fed to the MXU (bf16 by default)

    # x arrives as f32 straight from HBM; the cast is cheap VPU work hidden
    # under MXU slack (fused here instead of a separate XLA pass in the wrapper).
    h = x_ref[...].astype(cdt)                                        # (tile, 30)

    z = jnp.dot(h, w1_ref[...], preferred_element_type=jnp.float32) + b1_ref[...]
    h = jnp.maximum(z, 0.0).astype(cdt)                               # (tile, 128)

    z = jnp.dot(h, w2_ref[...], preferred_element_type=jnp.float32) + b2_ref[...]
    h = jnp.maximum(z, 0.0).astype(cdt)                               # (tile, 128) = 64 lane-padded

    z = jnp.dot(h, w3_ref[...], preferred_element_type=jnp.float32) + b3_ref[...]
    h = jnp.maximum(z, 0.0).astype(cdt)                               # (tile, 128) = 32 lane-padded

    out = jnp.dot(h, w4_ref[...], preferred_element_type=jnp.float32) + b4_ref[...]
    o_ref[...] = out.astype(o_ref.dtype)                              # (tile, 2)


def prepare_params(params, compute_dtype=jnp.bfloat16):
    """One-time (model-load) prep: zero-pad hidden fan-ins/fan-outs to 128 lanes
    and cast weights to the MXU dtype.

    Padded columns have zero weight and zero bias, and padded rows have zero
    weight, so (with ReLU) the padded lanes stay exactly 0 and the math is
    unchanged.  Biases stay float32 (added to the f32 accumulator).  Accepts
    either (fan_out,) or (1, fan_out) bias shapes.
    """
    dims = [INPUT_DIM] + HIDDEN_DIMS + [OUTPUT_DIM]
    padded = {}
    for li in range(1, len(dims)):
        w = jnp.asarray(params[f"w{li}"])
        b = jnp.asarray(params[f"b{li}"])
        if b.ndim == 1:
            b = b.reshape(1, -1)
        fan_in, fan_out = w.shape
        in_p = fan_in if fan_in == INPUT_DIM else _round_up(fan_in, LANE)
        out_p = fan_out if fan_out == OUTPUT_DIM else _round_up(fan_out, LANE)
        w = jnp.pad(w, ((0, in_p - fan_in), (0, out_p - fan_out)))
        b = jnp.pad(b, ((0, 0), (0, out_p - fan_out)))
        padded[f"w{li}"] = w.astype(compute_dtype)
        padded[f"b{li}"] = b.astype(jnp.float32)
    return padded


def _pick_tile(B, batch_tile):
    """Pick (padded_batch, tile): pad B to a multiple of 256, then take the
    largest 256-multiple tile that (a) divides the padded batch, (b) is
    <= batch_tile, and (c) leaves >= 2 grid steps whenever padded batch >= 512
    (so v7x's second TensorCore gets work and the pipeline can overlap)."""
    Bp = _round_up(max(B, 1), ROW_ALIGN)
    n_units = Bp // ROW_ALIGN
    max_units = max(batch_tile // ROW_ALIGN, 1)
    if n_units >= 2:
        max_units = min(max_units, n_units // 2)
    max_units = max(max_units, 1)
    best = 1
    for cand in range(1, max_units + 1):
        if n_units % cand == 0:
            best = cand
    return Bp, best * ROW_ALIGN


@functools.partial(jax.jit, static_argnames=("batch_tile",))
def xvectornet_forward(x, padded_params, *, batch_tile=4096):
    """x: [B, INPUT_DIM] float32.  padded_params: output of prepare_params()."""
    B, D = x.shape
    assert D == INPUT_DIM

    Bp, tile = _pick_tile(B, batch_tile)

    xp = x
    if Bp != B:
        xp = jnp.pad(x, ((0, Bp - B), (0, 0)))  # padded rows are sliced off below

    w1, b1 = padded_params["w1"], padded_params["b1"]
    w2, b2 = padded_params["w2"], padded_params["b2"]
    w3, b3 = padded_params["w3"], padded_params["b3"]
    w4, b4 = padded_params["w4"], padded_params["b4"]

    def whole(arr):
        # Full-array 2-D block with a constant index map: Pallas keeps these
        # small weight/bias operands resident in VMEM across all grid steps.
        return pl.BlockSpec(arr.shape, lambda i: (0, 0))

    grid = (Bp // tile,)

    out = pl.pallas_call(
        _mlp_kernel,
        out_shape=jax.ShapeDtypeStruct((Bp, OUTPUT_DIM), jnp.float32),
        grid_spec=pltpu.PrefetchScalarGridSpec(
            num_scalar_prefetch=0,
            grid=grid,
            in_specs=[
                pl.BlockSpec((tile, INPUT_DIM), lambda i: (i, 0)),  # x, f32
                whole(w1), whole(b1),
                whole(w2), whole(b2),
                whole(w3), whole(b3),
                whole(w4), whole(b4),
            ],
            out_specs=pl.BlockSpec((tile, OUTPUT_DIM), lambda i: (i, 0)),
        ),
        compiler_params=pltpu.CompilerParams(
            dimension_semantics=("parallel",)),
    )(xp, w1, b1, w2, b2, w3, b3, w4, b4)

    return out[:B]


def init_params(key):
    """Deterministic synthetic parameters (shapes match XVectorNet.__init__)."""
    dims = [INPUT_DIM] + HIDDEN_DIMS + [OUTPUT_DIM]
    params = {}
    keys = jax.random.split(key, 2 * (len(dims) - 1))
    for li in range(len(dims) - 1):
        fan_in, fan_out = dims[li], dims[li + 1]
        scale = 1.0 / jnp.sqrt(jnp.float32(fan_in))
        w = jax.random.uniform(keys[2 * li], (fan_in, fan_out),
                               minval=-scale, maxval=scale, dtype=jnp.float32)
        b = jax.random.uniform(keys[2 * li + 1], (1, fan_out),
                               minval=-scale, maxval=scale, dtype=jnp.float32)
        params[f"w{li + 1}"] = w
        params[f"b{li + 1}"] = b
    return params


def reference_forward(x, params, compute_dtype=jnp.bfloat16):
    """Pure-JAX reference mirroring the kernel's bf16-in / f32-accumulate math."""
    h = x.astype(compute_dtype)
    for li in range(1, 4):
        z = jnp.dot(h, params[f"w{li}"].astype(compute_dtype),
                    preferred_element_type=jnp.float32) + params[f"b{li}"]
        h = jnp.maximum(z, 0.0).astype(compute_dtype)
    return jnp.dot(h, params["w4"].astype(compute_dtype),
                   preferred_element_type=jnp.float32) + params["b4"]


if __name__ == "__main__":
    key = jax.random.PRNGKey(0)
    pkey, xkey = jax.random.split(key)
    params = init_params(pkey)

    # One-time parameter prep (lane padding + bf16 cast), outside the hot path.
    padded_params = prepare_params(params)

    B = 16  # small demo batch; wrapper pads it up to one lane/MXU-friendly tile
    x = jax.random.normal(xkey, (B, INPUT_DIM), dtype=jnp.float32)

    out = jax.block_until_ready(xvectornet_forward(x, padded_params))
    assert out.shape == (B, OUTPUT_DIM)

    # Exact-math mirror of the kernel (bf16 inputs/weights, f32 accumulation).
    ref = reference_forward(x, params)
    assert jnp.allclose(out, ref, atol=2e-3, rtol=2e-3), "mismatch vs JAX reference"

    # Loose sanity check vs full-float32 semantics of the original module.
    ref_f32 = reference_forward(x, params, compute_dtype=jnp.float32)
    assert jnp.allclose(out, ref_f32, atol=5e-2, rtol=5e-2), "drift vs f32 reference"

    # Exercise a batch that is not tile/256-aligned (ragged padding path).
    B2 = 1030
    x2 = jax.random.normal(xkey, (B2, INPUT_DIM), dtype=jnp.float32)
    out2 = jax.block_until_ready(xvectornet_forward(x2, padded_params))
    ref2 = reference_forward(x2, params)
    assert out2.shape == (B2, OUTPUT_DIM)
    assert jnp.allclose(out2, ref2, atol=2e-3, rtol=2e-3), "mismatch on ragged batch"

    print("KERNEL_OK")
</pallas_src>

<mosaic_0001>
module attributes {stable_mosaic.version = 11 : i64} {
  func.func @_mlp_kernel(%arg0: i32, %arg1: memref<256x30xf32, #tpu.memory_space<vmem>>, %arg2: memref<30x128xbf16, #tpu.memory_space<vmem>>, %arg3: memref<1x128xf32, #tpu.memory_space<vmem>>, %arg4: memref<128x128xbf16, #tpu.memory_space<vmem>>, %arg5: memref<1x128xf32, #tpu.memory_space<vmem>>, %arg6: memref<128x128xbf16, #tpu.memory_space<vmem>>, %arg7: memref<1x128xf32, #tpu.memory_space<vmem>>, %arg8: memref<128x2xbf16, #tpu.memory_space<vmem>>, %arg9: memref<1x2xf32, #tpu.memory_space<vmem>>, %arg10: memref<256x2xf32, #tpu.memory_space<vmem>>) attributes {dimension_semantics = [#tpu.dimension_semantics<parallel>], iteration_bounds = array<i64: 1>, scalar_prefetch = 0 : i64, scratch_operands = 0 : i64, tpu.core_type = #tpu.core_type<tc>, window_params = [{transform_indices = @transform_0, window_bounds = array<i64: 256, 30>}, {pipeline_mode = #tpu.pipeline_mode<synchronous>, transform_indices = @transform_1, window_bounds = array<i64: 30, 128>}, {pipeline_mode = #tpu.pipeline_mode<synchronous>, transform_indices = @transform_2, window_bounds = array<i64: 1, 128>}, {pipeline_mode = #tpu.pipeline_mode<synchronous>, transform_indices = @transform_3, window_bounds = array<i64: 128, 128>}, {pipeline_mode = #tpu.pipeline_mode<synchronous>, transform_indices = @transform_4, window_bounds = array<i64: 1, 128>}, {pipeline_mode = #tpu.pipeline_mode<synchronous>, transform_indices = @transform_5, window_bounds = array<i64: 128, 128>}, {pipeline_mode = #tpu.pipeline_mode<synchronous>, transform_indices = @transform_6, window_bounds = array<i64: 1, 128>}, {pipeline_mode = #tpu.pipeline_mode<synchronous>, transform_indices = @transform_7, window_bounds = array<i64: 128, 2>}, {pipeline_mode = #tpu.pipeline_mode<synchronous>, transform_indices = @transform_8, window_bounds = array<i64: 1, 2>}, {transform_indices = @transform_9, window_bounds = array<i64: 256, 2>}]} {
    %c0 = arith.constant 0 : index
    %c0_0 = arith.constant 0 : index
    %0 = vector.load %arg1[%c0, %c0_0] : memref<256x30xf32, #tpu.memory_space<vmem>>, vector<256x30xf32>
    %1 = arith.truncf %0 : vector<256x30xf32> to vector<256x30xbf16>
    %c0_1 = arith.constant 0 : index
    %c0_2 = arith.constant 0 : index
    %2 = vector.load %arg2[%c0_1, %c0_2] : memref<30x128xbf16, #tpu.memory_space<vmem>>, vector<30x128xbf16>
    %cst = arith.constant dense<0.000000e+00> : vector<256x128xf32>
    %3 = tpu.matmul %1, %2, %cst {dimension_numbers = #tpu.dot_dimension_numbers<[1], [0], [0], [1], [0, 0, 1, 1], [], []>} : vector<256x30xbf16>, vector<30x128xbf16>, vector<256x128xf32> -> vector<256x128xf32>
    %c0_3 = arith.constant 0 : index
    %c0_4 = arith.constant 0 : index
    %4 = vector.load %arg3[%c0_3, %c0_4] : memref<1x128xf32, #tpu.memory_space<vmem>>, vector<1x128xf32>
    %5 = vector.broadcast %4 : vector<1x128xf32> to vector<256x128xf32>
    %6 = arith.addf %3, %5 : vector<256x128xf32>
    %cst_5 = arith.constant 0.000000e+00 : f32
    %7 = vector.broadcast %cst_5 : f32 to vector<256x128xf32>
    %8 = arith.maximumf %6, %7 : vector<256x128xf32>
    %9 = arith.truncf %8 : vector<256x128xf32> to vector<256x128xbf16>
    %c0_6 = arith.constant 0 : index
    %c0_7 = arith.constant 0 : index
    %10 = vector.load %arg4[%c0_6, %c0_7] : memref<128x128xbf16, #tpu.memory_space<vmem>>, vector<128x128xbf16>
    %cst_8 = arith.constant dense<0.000000e+00> : vector<256x128xf32>
    %11 = tpu.matmul %9, %10, %cst_8 {dimension_numbers = #tpu.dot_dimension_numbers<[1], [0], [0], [1], [0, 0, 1, 1], [], []>} : vector<256x128xbf16>, vector<128x128xbf16>, vector<256x128xf32> -> vector<256x128xf32>
    %c0_9 = arith.constant 0 : index
    %c0_10 = arith.constant 0 : index
    %12 = vector.load %arg5[%c0_9, %c0_10] : memref<1x128xf32, #tpu.memory_space<vmem>>, vector<1x128xf32>
    %13 = vector.broadcast %12 : vector<1x128xf32> to vector<256x128xf32>
    %14 = arith.addf %11, %13 : vector<256x128xf32>
    %cst_11 = arith.constant 0.000000e+00 : f32
    %15 = vector.broadcast %cst_11 : f32 to vector<256x128xf32>
    %16 = arith.maximumf %14, %15 : vector<256x128xf32>
    %17 = arith.truncf %16 : vector<256x128xf32> to vector<256x128xbf16>
    %c0_12 = arith.constant 0 : index
    %c0_13 = arith.constant 0 : index
    %18 = vector.load %arg6[%c0_12, %c0_13] : memref<128x128xbf16, #tpu.memory_space<vmem>>, vector<128x128xbf16>
    %cst_14 = arith.constant dense<0.000000e+00> : vector<256x128xf32>
    %19 = tpu.matmul %17, %18, %cst_14 {dimension_numbers = #tpu.dot_dimension_numbers<[1], [0], [0], [1], [0, 0, 1, 1], [], []>} : vector<256x128xbf16>, vector<128x128xbf16>, vector<256x128xf32> -> vector<256x128xf32>
    %c0_15 = arith.constant 0 : index
    %c0_16 = arith.constant 0 : index
    %20 = vector.load %arg7[%c0_15, %c0_16] : memref<1x128xf32, #tpu.memory_space<vmem>>, vector<1x128xf32>
    %21 = vector.broadcast %20 : vector<1x128xf32> to vector<256x128xf32>
    %22 = arith.addf %19, %21 : vector<256x128xf32>
    %cst_17 = arith.constant 0.000000e+00 : f32
    %23 = vector.broadcast %cst_17 : f32 to vector<256x128xf32>
    %24 = arith.maximumf %22, %23 : vector<256x128xf32>
    %25 = arith.truncf %24 : vector<256x128xf32> to vector<256x128xbf16>
    %c0_18 = arith.constant 0 : index
    %c0_19 = arith.constant 0 : index
    %26 = vector.load %arg8[%c0_18, %c0_19] : memref<128x2xbf16, #tpu.memory_space<vmem>>, vector<128x2xbf16>
    %cst_20 = arith.constant dense<0.000000e+00> : vector<256x2xf32>
    %27 = tpu.matmul %25, %26, %cst_20 {dimension_numbers = #tpu.dot_dimension_numbers<[1], [0], [0], [1], [0, 0, 1, 1], [], []>} : vector<256x128xbf16>, vector<128x2xbf16>, vector<256x2xf32> -> vector<256x2xf32>
    %c0_21 = arith.constant 0 : index
    %c0_22 = arith.constant 0 : index
    %28 = vector.load %arg9[%c0_21, %c0_22] : memref<1x2xf32, #tpu.memory_space<vmem>>, vector<1x2xf32>
    %29 = vector.broadcast %28 : vector<1x2xf32> to vector<256x2xf32>
    %30 = arith.addf %27, %29 : vector<256x2xf32>
    %c0_23 = arith.constant 0 : index
    %c0_24 = arith.constant 0 : index
    %31 = vector.load %arg10[%c0_23, %c0_24] : memref<256x2xf32, #tpu.memory_space<vmem>>, vector<256x2xf32>
    tpu.vector_store %arg10[%c0_23, %c0_24], %30 {strides = array<i32>} : memref<256x2xf32, #tpu.memory_space<vmem>>, vector<256x2xf32>,
    return
  }
  func.func @transform_0(%arg0: i32) -> (i32, i32) {
    %c0_i32 = arith.constant 0 : i32
    %c0_i32_0 = arith.constant 0 : i32
    return %arg0, %c0_i32 : i32, i32
  }
  func.func @transform_1(%arg0: i32) -> (i32, i32) {
    %c0_i32 = arith.constant 0 : i32
    %c0_i32_0 = arith.constant 0 : i32
    %c0_i32_1 = arith.constant 0 : i32
    return %c0_i32, %c0_i32_0 : i32, i32
  }
  func.func @transform_2(%arg0: i32) -> (i32, i32) {
    %c0_i32 = arith.constant 0 : i32
    %c0_i32_0 = arith.constant 0 : i32
    %c0_i32_1 = arith.constant 0 : i32
    return %c0_i32, %c0_i32_0 : i32, i32
  }
  func.func @transform_3(%arg0: i32) -> (i32, i32) {
    %c0_i32 = arith.constant 0 : i32
    %c0_i32_0 = arith.constant 0 : i32
    %c0_i32_1 = arith.constant 0 : i32
    return %c0_i32, %c0_i32_0 : i32, i32
  }
  func.func @transform_4(%arg0: i32) -> (i32, i32) {
    %c0_i32 = arith.constant 0 : i32
    %c0_i32_0 = arith.constant 0 : i32
    %c0_i32_1 = arith.constant 0 : i32
    return %c0_i32, %c0_i32_0 : i32, i32
  }
  func.func @transform_5(%arg0: i32) -> (i32, i32) {
    %c0_i32 = arith.constant 0 : i32
    %c0_i32_0 = arith.constant 0 : i32
    %c0_i32_1 = arith.constant 0 : i32
    return %c0_i32, %c0_i32_0 : i32, i32
  }
  func.func @transform_6(%arg0: i32) -> (i32, i32) {
    %c0_i32 = arith.constant 0 : i32
    %c0_i32_0 = arith.constant 0 : i32
    %c0_i32_1 = arith.constant 0 : i32
    return %c0_i32, %c0_i32_0 : i32, i32
  }
  func.func @transform_7(%arg0: i32) -> (i32, i32) {
    %c0_i32 = arith.constant 0 : i32
    %c0_i32_0 = arith.constant 0 : i32
    %c0_i32_1 = arith.constant 0 : i32
    return %c0_i32, %c0_i32_0 : i32, i32
  }
  func.func @transform_8(%arg0: i32) -> (i32, i32) {
    %c0_i32 = arith.constant 0 : i32
    %c0_i32_0 = arith.constant 0 : i32
    %c0_i32_1 = arith.constant 0 : i32
    return %c0_i32, %c0_i32_0 : i32, i32
  }
  func.func @transform_9(%arg0: i32) -> (i32, i32) {
    %c0_i32 = arith.constant 0 : i32
    %c0_i32_0 = arith.constant 0 : i32
    return %arg0, %c0_i32 : i32, i32
  }
}

</mosaic_0001>

<llo_original>
// kernel: xvectornet_forward.1
$region0: #{xvectornet_forward.1}
  #allocation0 [shape = 'u32[]', space=smem, size = 0x4, offset = 0x4, fixed_abs, tag = 'smem constant byte address 0x4 - core index']
  #allocation1 [shape = 'u32[144,128]{1,0:T(1,128)}', space=vmem, size = 0x12000, scoped, tag = 'internal scratch']
  %s0 = inlined_call_operand.vmem [shape: f32[256,30], index: 0, kind: input, shape index: {}]
  %s1 = inlined_call_operand.vmem [shape: bf16[30,128], index: 1, kind: input, shape index: {}]
  %s2 = inlined_call_operand.vmem [shape: f32[1,128], index: 2, kind: input, shape index: {}]
  %s3 = inlined_call_operand.vmem [shape: bf16[128,128], index: 3, kind: input, shape index: {}]
  %s4 = inlined_call_operand.vmem [shape: f32[1,128], index: 4, kind: input, shape index: {}]
  %s5 = inlined_call_operand.vmem [shape: bf16[128,128], index: 5, kind: input, shape index: {}]
  %s6 = inlined_call_operand.vmem [shape: f32[1,128], index: 6, kind: input, shape index: {}]
  %s7 = inlined_call_operand.vmem [shape: bf16[128,2], index: 7, kind: input, shape index: {}]
  %s8 = inlined_call_operand.vmem [shape: f32[1,2], index: 8, kind: input, shape index: {}]
  %s9 = inlined_call_operand.vmem [shape: f32[256,2], index: 9, kind: output, shape index: {}]
  %s10 = sld [smem:[#allocation0]]
  $region46: #{xvectornet_forward.1} parent=0
    _
  %s12 = ssub.s32 1, %s10
  %s13 = scalar_select 0, %s12, %s10
  // Predicated region
  $region2: #{xvectornet_forward.1} parent=0 // pred_check
    _
  $region3: #{xvectornet_forward.1} parent=0 // pred_check_branch
    %15 = sbr.rel (0) target = $region5
  $region4: #{xvectornet_forward.1} parent=0 // pred_region
    _
  $region5: #{xvectornet_forward.1} parent=0 // pred_fallthru
    _
  // Predicated region
  $region6: #{xvectornet_forward.1} parent=0 // pred_check
    _
  $region7: #{xvectornet_forward.1} parent=0 // pred_check_branch
    %17 = sbr.rel (0) target = $region9
  $region8: #{xvectornet_forward.1} parent=0 // pred_region
    _
  $region9: #{xvectornet_forward.1} parent=0 // pred_fallthru
    _
  // Predicated region
  $region10: #{xvectornet_forward.1} parent=0 // pred_check
    _
  $region11: #{xvectornet_forward.1} parent=0 // pred_check_branch
    %19 = sbr.rel (0) target = $region13
  $region12: #{xvectornet_forward.1} parent=0 // pred_region
    _
  $region13: #{xvectornet_forward.1} parent=0 // pred_fallthru
    _
  // Predicated region
  $region14: #{xvectornet_forward.1} parent=0 // pred_check
    _
  $region15: #{xvectornet_forward.1} parent=0 // pred_check_branch
    %21 = sbr.rel (0) target = $region17
  $region16: #{xvectornet_forward.1} parent=0 // pred_region
    _
  $region17: #{xvectornet_forward.1} parent=0 // pred_fallthru
    _
  // Predicated region
  $region18: #{xvectornet_forward.1} parent=0 // pred_check
    _
  $region19: #{xvectornet_forward.1} parent=0 // pred_check_branch
    %23 = sbr.rel (0) target = $region21
  $region20: #{xvectornet_forward.1} parent=0 // pred_region
    _
  $region21: #{xvectornet_forward.1} parent=0 // pred_fallthru
    _
  // Predicated region
  $region22: #{xvectornet_forward.1} parent=0 // pred_check
    _
  $region23: #{xvectornet_forward.1} parent=0 // pred_check_branch
    %25 = sbr.rel (0) target = $region25
  $region24: #{xvectornet_forward.1} parent=0 // pred_region
    _
  $region25: #{xvectornet_forward.1} parent=0 // pred_fallthru
    _
  // Predicated region
  $region26: #{xvectornet_forward.1} parent=0 // pred_check
    _
  $region27: #{xvectornet_forward.1} parent=0 // pred_check_branch
    %27 = sbr.rel (0) target = $region29
  $region28: #{xvectornet_forward.1} parent=0 // pred_region
    _
  $region29: #{xvectornet_forward.1} parent=0 // pred_fallthru
    _
  // Predicated region
  $region30: #{xvectornet_forward.1} parent=0 // pred_check
    _
  $region31: #{xvectornet_forward.1} parent=0 // pred_check_branch
    %29 = sbr.rel (0) target = $region33
  $region32: #{xvectornet_forward.1} parent=0 // pred_region
    _
  $region33: #{xvectornet_forward.1} parent=0 // pred_fallthru
    _
  // Predicated region
  $region34: #{xvectornet_forward.1} parent=0 // pred_check
    _
  $region35: #{xvectornet_forward.1} parent=0 // pred_check_branch
    %31 = sbr.rel (0) target = $region37
  $region36: #{xvectornet_forward.1} parent=0 // pred_region
    _
  $region37: #{xvectornet_forward.1} parent=0 // pred_fallthru
    _
  %v33 = vld [vmem:[%s0] sm:$0xff]
  %v34 = vld [vmem:[%s0 + $0x8] sm:$0xff]
  %v35 = vld [vmem:[%s0 + $0x10] sm:$0xff]
  %v36 = vld [vmem:[%s0 + $0x18] sm:$0xff]
  %v37 = vld [vmem:[%s0 + $0x20] sm:$0xff]
  %v38 = vld [vmem:[%s0 + $0x28] sm:$0xff]
  %v39 = vld [vmem:[%s0 + $0x30] sm:$0xff]
  %v40 = vld [vmem:[%s0 + $0x38] sm:$0xff]
  %v41 = vld [vmem:[%s0 + $0x40] sm:$0xff]
  %v42 = vld [vmem:[%s0 + $0x48] sm:$0xff]
  %v43 = vld [vmem:[%s0 + $0x50] sm:$0xff]
  %v44 = vld [vmem:[%s0 + $0x58] sm:$0xff]
  %v45 = vld [vmem:[%s0 + $0x60] sm:$0xff]
  %v46 = vld [vmem:[%s0 + $0x68] sm:$0xff]
  %v47 = vld [vmem:[%s0 + $0x70] sm:$0xff]
  %v48 = vld [vmem:[%s0 + $0x78] sm:$0xff]
  %v49 = vld [vmem:[%s0 + $0x80] sm:$0xff]
  %v50 = vld [vmem:[%s0 + $0x88] sm:$0xff]
  %v51 = vld [vmem:[%s0 + $0x90] sm:$0xff]
  %v52 = vld [vmem:[%s0 + $0x98] sm:$0xff]
  %v53 = vld [vmem:[%s0 + $0xa0] sm:$0xff]
  %v54 = vld [vmem:[%s0 + $0xa8] sm:$0xff]
  %v55 = vld [vmem:[%s0 + $0xb0] sm:$0xff]
  %v56 = vld [vmem:[%s0 + $0xb8] sm:$0xff]
  %v57 = vld [vmem:[%s0 + $0xc0] sm:$0xff]
  %v58 = vld [vmem:[%s0 + $0xc8] sm:$0xff]
  %v59 = vld [vmem:[%s0 + $0xd0] sm:$0xff]
  %v60 = vld [vmem:[%s0 + $0xd8] sm:$0xff]
  %v61 = vld [vmem:[%s0 + $0xe0] sm:$0xff]
  %v62 = vld [vmem:[%s0 + $0xe8] sm:$0xff]
  %v63 = vld [vmem:[%s0 + $0xf0] sm:$0xff]
  %v64 = vld [vmem:[%s0 + $0xf8] sm:$0xff]
  %v65 = vpack.c.bf16 %v34, %v33
  %v66 = vpack.c.bf16 %v36, %v35
  %v67 = vpack.c.bf16 %v38, %v37
  %v68 = vpack.c.bf16 %v40, %v39
  %v69 = vpack.c.bf16 %v42, %v41
  %v70 = vpack.c.bf16 %v44, %v43
  %v71 = vpack.c.bf16 %v46, %v45
  %v72 = vpack.c.bf16 %v48, %v47
  %v73 = vpack.c.bf16 %v50, %v49
  %v74 = vpack.c.bf16 %v52, %v51
  %v75 = vpack.c.bf16 %v54, %v53
  %v76 = vpack.c.bf16 %v56, %v55
  %v77 = vpack.c.bf16 %v58, %v57
  %v78 = vpack.c.bf16 %v60, %v59
  %v79 = vpack.c.bf16 %v62, %v61
  %v80 = vpack.c.bf16 %v64, %v63
  %v81 = vld [vmem:[%s1] sm:$0xf]
  %v82 = vld [vmem:[%s1 + $0x4] sm:$0xf]
  %v83 = vld [vmem:[%s1 + $0x8] sm:$0xf]
  %v84 = vld [vmem:[%s1 + $0xc] sm:$0x7]
  %v85 = vld [vmem:[%s2] sm:$0x1]
  %v87 = vlaneseq
  %v88 = vshrl.u32 %v87, 7
  %v89 = vsub.s32 0, %v88
  %v90 = vrot.slane %v85, %v89
  %v96 = vunpack.c.l.b16 %v81
  %v97 = vunpack.c.l.b16 %v82
  %v98 = vunpack.c.l.b16 %v83
  %v99 = vunpack.c.l.b16 %v84
  %v100 = vpack.c.b16 %v97, %v96
  %v101 = vpack.c.b16 %v99, %v98
  %vm103 = vcmask 244736
  %v105 = vsel %vm103, %v65, 0
  %v108 = vsel %vm103, %v66, 0
  %v111 = vsel %vm103, %v67, 0
  %v114 = vsel %vm103, %v68, 0
  %v117 = vsel %vm103, %v69, 0
  %v120 = vsel %vm103, %v70, 0
  %v123 = vsel %vm103, %v71, 0
  %v126 = vsel %vm103, %v72, 0
  %v129 = vsel %vm103, %v73, 0
  %v132 = vsel %vm103, %v74, 0
  %v135 = vsel %vm103, %v75, 0
  %v138 = vsel %vm103, %v76, 0
  %v141 = vsel %vm103, %v77, 0
  %v144 = vsel %vm103, %v78, 0
  %v147 = vsel %vm103, %v79, 0
  %v150 = vsel %vm103, %v80, 0
  %vm152 = vcmask 1046528
  %v154 = vsel %vm152, %v101, 0
  %156 = vmatprep.subr.bf16.mxu0 0
  %157 = vmatpush1.bf16.msra.mxu0 0
  %158 = vmatprep.subr.bf16.mxu0 0
  %159 = vmatpush1.bf16.msra.mxu0 0
  %160 = vmatprep.subr.bf16.mxu0 0
  %161 = vmatpush1.bf16.msra.mxu0 0
  %162 = vmatprep.subr.bf16.mxu0 0
  %163 = vmatpush1.bf16.msra.mxu0 0
  %164 = vmatprep.subr.bf16.mxu0 0
  %165 = vmatpush1.bf16.msra.mxu0 0
  %166 = vmatprep.subr.bf16.mxu0 0
  %167 = vmatpush1.bf16.msra.mxu0 0
  %168 = vmatprep.subr.bf16.mxu0 0
  %169 = vmatpush1.bf16.msra.mxu0 %v154
  %170 = vmatprep.subr.bf16.mxu0 0
  %171 = vmatpush1.bf16.msra.mxu0 %v100
  %172 = vmatprep.subr.bf16.mxu0 0
  %173 = vmatpush2.bf16.msra.mxu0 0
  %174 = vmatprep.subr.bf16.mxu0 0
  %175 = vmatpush2.bf16.msra.mxu0 0
  %176 = vmatprep.subr.bf16.mxu0 0
  %177 = vmatpush2.bf16.msra.mxu0 0
  %178 = vmatprep.subr.bf16.mxu0 0
  %179 = vmatpush2.bf16.msra.mxu0 0
  %180 = vmatprep.subr.bf16.mxu0 0
  %181 = vmatpush2.bf16.msra.mxu0 0
  %182 = vmatprep.subr.bf16.mxu0 0
  %183 = vmatpush2.bf16.msra.mxu0 0
  %184 = vmatprep.subr.bf16.mxu0 0
  %185 = vmatpush2.bf16.msra.mxu0 0
  %186 = vmatprep.subr.bf16.mxu0 0
  %187 = vmatpush2.bf16.msra.mxu0 0
  %188 = vmatprep.mubr.bf16.mxu0 0
  %189 = vmatmul.mubr.bf16.gmra.mxu0 %v105
  %v190 = vpop.f32.mrf.mxu0
  %v191 = vadd.f32 %v90, %v190
  %v192 = vpop.f32.mrf.mxu0
  %v193 = vpop.f32.mrf.mxu0
  %v194 = vadd.f32 %v90, %v193
  %v195 = vpop.f32.mrf.mxu0
  %196 = vmatprep.mubr.bf16.mxu0 0
  %197 = vmatmul.mubr.bf16.gmra.mxu0 %v108
  %v198 = vpop.f32.mrf.mxu0
  %v199 = vadd.f32 %v90, %v198
  %v200 = vpop.f32.mrf.mxu0
  %v201 = vpop.f32.mrf.mxu0
  %v202 = vadd.f32 %v90, %v201
  %v203 = vpop.f32.mrf.mxu0
  %204 = vmatprep.mubr.bf16.mxu0 0
  %205 = vmatmul.mubr.bf16.gmra.mxu0 %v111
  %v206 = vpop.f32.mrf.mxu0
  %v207 = vadd.f32 %v90, %v206
  %v208 = vpop.f32.mrf.mxu0
  %v209 = vpop.f32.mrf.mxu0
  %v210 = vadd.f32 %v90, %v209
  %v211 = vpop.f32.mrf.mxu0
  %212 = vmatprep.mubr.bf16.mxu0 0
  %213 = vmatmul.mubr.bf16.gmra.mxu0 %v114
  %v214 = vpop.f32.mrf.mxu0
  %v215 = vadd.f32 %v90, %v214
  %v216 = vpop.f32.mrf.mxu0
  %v217 = vpop.f32.mrf.mxu0
  %v218 = vadd.f32 %v90, %v217
  %v219 = vpop.f32.mrf.mxu0
  %220 = vmatprep.mubr.bf16.mxu0 0
  %221 = vmatmul.mubr.bf16.gmra.mxu0 %v117
  %v222 = vpop.f32.mrf.mxu0
  %v223 = vadd.f32 %v90, %v222
  %v224 = vpop.f32.mrf.mxu0
  %v225 = vpop.f32.mrf.mxu0
  %v226 = vadd.f32 %v90, %v225
  %v227 = vpop.f32.mrf.mxu0
  %228 = vmatprep.mubr.bf16.mxu0 0
  %229 = vmatmul.mubr.bf16.gmra.mxu0 %v120
  %v230 = vpop.f32.mrf.mxu0
  %v231 = vadd.f32 %v90, %v230
  %v232 = vpop.f32.mrf.mxu0
  %v233 = vpop.f32.mrf.mxu0
  %v234 = vadd.f32 %v90, %v233
  %v235 = vpop.f32.mrf.mxu0
  %236 = vmatprep.mubr.bf16.mxu0 0
  %237 = vmatmul.mubr.bf16.gmra.mxu0 %v123
  %v238 = vpop.f32.mrf.mxu0
  %v239 = vadd.f32 %v90, %v238
  %v240 = vpop.f32.mrf.mxu0
  %v241 = vpop.f32.mrf.mxu0
  %v242 = vadd.f32 %v90, %v241
  %v243 = vpop.f32.mrf.mxu0
  %244 = vmatprep.mubr.bf16.mxu0 0
  %245 = vmatmul.mubr.bf16.gmra.mxu0 %v126
  %v246 = vpop.f32.mrf.mxu0
  %v247 = vadd.f32 %v90, %v246
  %v248 = vpop.f32.mrf.mxu0
  %v249 = vpop.f32.mrf.mxu0
  %v250 = vadd.f32 %v90, %v249
  %v251 = vpop.f32.mrf.mxu0
  %252 = vmatprep.mubr.bf16.mxu0 0
  %253 = vmatmul.mubr.bf16.gmra.mxu0 %v129
  %v254 = vpop.f32.mrf.mxu0
  %v255 = vadd.f32 %v90, %v254
  %v256 = vpop.f32.mrf.mxu0
  %v257 = vpop.f32.mrf.mxu0
  %v258 = vadd.f32 %v90, %v257
  %v259 = vpop.f32.mrf.mxu0
  %260 = vmatprep.mubr.bf16.mxu0 0
  %261 = vmatmul.mubr.bf16.gmra.mxu0 %v132
  %v262 = vpop.f32.mrf.mxu0
  %v263 = vadd.f32 %v90, %v262
  %v264 = vpop.f32.mrf.mxu0
  %v265 = vpop.f32.mrf.mxu0
  %v266 = vadd.f32 %v90, %v265
  %v267 = vpop.f32.mrf.mxu0
  %268 = vmatprep.mubr.bf16.mxu0 0
  %269 = vmatmul.mubr.bf16.gmra.mxu0 %v135
  %v270 = vpop.f32.mrf.mxu0
  %v271 = vadd.f32 %v90, %v270
  %v272 = vpop.f32.mrf.mxu0
  %v273 = vpop.f32.mrf.mxu0
  %v274 = vadd.f32 %v90, %v273
  %v275 = vpop.f32.mrf.mxu0
  %276 = vmatprep.mubr.bf16.mxu0 0
  %277 = vmatmul.mubr.bf16.gmra.mxu0 %v138
  %v278 = vpop.f32.mrf.mxu0
  %v279 = vadd.f32 %v90, %v278
  %v280 = vpop.f32.mrf.mxu0
  %v281 = vpop.f32.mrf.mxu0
  %v282 = vadd.f32 %v90, %v281
  %v283 = vpop.f32.mrf.mxu0
  %284 = vmatprep.mubr.bf16.mxu0 0
  %285 = vmatmul.mubr.bf16.gmra.mxu0 %v141
  %v286 = vpop.f32.mrf.mxu0
  %v287 = vadd.f32 %v90, %v286
  %v288 = vpop.f32.mrf.mxu0
  %v289 = vpop.f32.mrf.mxu0
  %v290 = vadd.f32 %v90, %v289
  %v291 = vpop.f32.mrf.mxu0
  %292 = vmatprep.mubr.bf16.mxu0 0
  %293 = vmatmul.mubr.bf16.gmra.mxu0 %v144
  %v294 = vpop.f32.mrf.mxu0
  %v295 = vadd.f32 %v90, %v294
  %v296 = vpop.f32.mrf.mxu0
  %v297 = vpop.f32.mrf.mxu0
  %v298 = vadd.f32 %v90, %v297
  %v299 = vpop.f32.mrf.mxu0
  %300 = vmatprep.mubr.bf16.mxu0 0
  %301 = vmatmul.mubr.bf16.gmra.mxu0 %v147
  %v302 = vpop.f32.mrf.mxu0
  %v303 = vadd.f32 %v90, %v302
  %v304 = vpop.f32.mrf.mxu0
  %v305 = vpop.f32.mrf.mxu0
  %v306 = vadd.f32 %v90, %v305
  %v307 = vpop.f32.mrf.mxu0
  %308 = vmatprep.mubr.bf16.mxu0 0
  %309 = vmatmul.mubr.bf16.gmra.mxu0 %v150
  %v310 = vpop.f32.mrf.mxu0
  %v311 = vadd.f32 %v90, %v310
  %v312 = vpop.f32.mrf.mxu0
  %v313 = vpop.f32.mrf.mxu0
  %v314 = vadd.f32 %v90, %v313
  %v315 = vpop.f32.mrf.mxu0
  %316 = vdwg.mxu0
  %v317 = vmax.f32 %v191, 0.0
  %v318 = vmax.f32 %v194, 0.0
  %v319 = vmax.f32 %v199, 0.0
  %v320 = vmax.f32 %v202, 0.0
  %v321 = vmax.f32 %v207, 0.0
  %v322 = vmax.f32 %v210, 0.0
  %v323 = vmax.f32 %v215, 0.0
  %v324 = vmax.f32 %v218, 0.0
  %v325 = vmax.f32 %v223, 0.0
  %v326 = vmax.f32 %v226, 0.0
  %v327 = vmax.f32 %v231, 0.0
  %v328 = vmax.f32 %v234, 0.0
  %v329 = vmax.f32 %v239, 0.0
  %v330 = vmax.f32 %v242, 0.0
  %v331 = vmax.f32 %v247, 0.0
  %v332 = vmax.f32 %v250, 0.0
  %v333 = vmax.f32 %v255, 0.0
  %v334 = vmax.f32 %v258, 0.0
  %v335 = vmax.f32 %v263, 0.0
  %v336 = vmax.f32 %v266, 0.0
  %v337 = vmax.f32 %v271, 0.0
  %v338 = vmax.f32 %v274, 0.0
  %v339 = vmax.f32 %v279, 0.0
  %v340 = vmax.f32 %v282, 0.0
  %v341 = vmax.f32 %v287, 0.0
  %v342 = vmax.f32 %v290, 0.0
  %v343 = vmax.f32 %v295, 0.0
  %v344 = vmax.f32 %v298, 0.0
  %v345 = vmax.f32 %v303, 0.0
  %v346 = vmax.f32 %v306, 0.0
  %v347 = vmax.f32 %v311, 0.0
  %v348 = vmax.f32 %v314, 0.0
  %v349 = vpack.c.bf16 %v318, %v317
  %v350 = vpack.c.bf16 %v320, %v319
  %v351 = vpack.c.bf16 %v322, %v321
  %v352 = vpack.c.bf16 %v324, %v323
  %v353 = vpack.c.bf16 %v326, %v325
  %v354 = vpack.c.bf16 %v328, %v327
  %v355 = vpack.c.bf16 %v330, %v329
  %v356 = vpack.c.bf16 %v332, %v331
  %v357 = vpack.c.bf16 %v334, %v333
  %v358 = vpack.c.bf16 %v336, %v335
  %v359 = vpack.c.bf16 %v338, %v337
  %v360 = vpack.c.bf16 %v340, %v339
  %v361 = vpack.c.bf16 %v342, %v341
  %v362 = vpack.c.bf16 %v344, %v343
  %v363 = vpack.c.bf16 %v346, %v345
  %v364 = vpack.c.bf16 %v348, %v347
  %v365 = vld [vmem:[%s3] sm:$0xf]
  %v366 = vld [vmem:[%s3 + $0x4] sm:$0xf]
  %v367 = vld [vmem:[%s3 + $0x8] sm:$0xf]
  %v368 = vld [vmem:[%s3 + $0xc] sm:$0xf]
  %v369 = vld [vmem:[%s3 + $0x10] sm:$0xf]
  %v370 = vld [vmem:[%s3 + $0x14] sm:$0xf]
  %v371 = vld [vmem:[%s3 + $0x18] sm:$0xf]
  %v372 = vld [vmem:[%s3 + $0x1c] sm:$0xf]
  %v373 = vld [vmem:[%s3 + $0x20] sm:$0xf]
  %v374 = vld [vmem:[%s3 + $0x24] sm:$0xf]
  %v375 = vld [vmem:[%s3 + $0x28] sm:$0xf]
  %v376 = vld [vmem:[%s3 + $0x2c] sm:$0xf]
  %v377 = vld [vmem:[%s3 + $0x30] sm:$0xf]
  %v378 = vld [vmem:[%s3 + $0x34] sm:$0xf]
  %v379 = vld [vmem:[%s3 + $0x38] sm:$0xf]
  %v380 = vld [vmem:[%s3 + $0x3c] sm:$0xf]
  %v381 = vld [vmem:[%s4] sm:$0x1]
  %v383 = vlaneseq
  %v384 = vshrl.u32 %v383, 7
  %v385 = vsub.s32 0, %v384
  %v386 = vrot.slane %v381, %v385
  %v404 = vunpack.c.l.b16 %v365
  %v405 = vunpack.c.l.b16 %v366
  %v406 = vunpack.c.l.b16 %v367
  %v407 = vunpack.c.l.b16 %v368
  %v408 = vunpack.c.l.b16 %v369
  %v409 = vunpack.c.l.b16 %v370
  %v410 = vunpack.c.l.b16 %v371
  %v411 = vunpack.c.l.b16 %v372
  %v412 = vunpack.c.l.b16 %v373
  %v413 = vunpack.c.l.b16 %v374
  %v414 = vunpack.c.l.b16 %v375
  %v415 = vunpack.c.l.b16 %v376
  %v416 = vunpack.c.l.b16 %v377
  %v417 = vunpack.c.l.b16 %v378
  %v418 = vunpack.c.l.b16 %v379
  %v419 = vunpack.c.l.b16 %v380
  %v420 = vpack.c.b16 %v405, %v404
  %v421 = vpack.c.b16 %v407, %v406
  %v422 = vpack.c.b16 %v409, %v408
  %v423 = vpack.c.b16 %v411, %v410
  %v424 = vpack.c.b16 %v413, %v412
  %v425 = vpack.c.b16 %v415, %v414
  %v426 = vpack.c.b16 %v417, %v416
  %v427 = vpack.c.b16 %v419, %v418
  %436 = vmatprep.subr.bf16.mxu0 0
  %437 = vmatpush1.bf16.msra.mxu0 %v427
  %438 = vmatprep.subr.bf16.mxu0 0
  %439 = vmatpush1.bf16.msra.mxu0 %v426
  %440 = vmatprep.subr.bf16.mxu0 0
  %441 = vmatpush1.bf16.msra.mxu0 %v425
  %442 = vmatprep.subr.bf16.mxu0 0
  %443 = vmatpush1.bf16.msra.mxu0 %v424
  %444 = vmatprep.subr.bf16.mxu0 0
  %445 = vmatpush1.bf16.msra.mxu0 %v423
  %446 = vmatprep.subr.bf16.mxu0 0
  %447 = vmatpush1.bf16.msra.mxu0 %v422
  %448 = vmatprep.subr.bf16.mxu0 0
  %449 = vmatpush1.bf16.msra.mxu0 %v421
  %450 = vmatprep.subr.bf16.mxu0 0
  %451 = vmatpush1.bf16.msra.mxu0 %v420
  %452 = vmatprep.subr.bf16.mxu0 0
  %453 = vmatpush2.bf16.msra.mxu0 0
  %454 = vmatprep.subr.bf16.mxu0 0
  %455 = vmatpush2.bf16.msra.mxu0 0
  %456 = vmatprep.subr.bf16.mxu0 0
  %457 = vmatpush2.bf16.msra.mxu0 0
  %458 = vmatprep.subr.bf16.mxu0 0
  %459 = vmatpush2.bf16.msra.mxu0 0
  %460 = vmatprep.subr.bf16.mxu0 0
  %461 = vmatpush2.bf16.msra.mxu0 0
  %462 = vmatprep.subr.bf16.mxu0 0
  %463 = vmatpush2.bf16.msra.mxu0 0
  %464 = vmatprep.subr.bf16.mxu0 0
  %465 = vmatpush2.bf16.msra.mxu0 0
  %466 = vmatprep.subr.bf16.mxu0 0
  %467 = vmatpush2.bf16.msra.mxu0 0
  %468 = vmatprep.mubr.bf16.mxu0 0
  %469 = vmatmul.mubr.bf16.gmra.mxu0 %v349
  %v470 = vpop.f32.mrf.mxu0
  %v471 = vadd.f32 %v386, %v470
  %v472 = vpop.f32.mrf.mxu0
  %v473 = vpop.f32.mrf.mxu0
  %v474 = vadd.f32 %v386, %v473
  %v475 = vpop.f32.mrf.mxu0
  %476 = vmatprep.mubr.bf16.mxu0 0
  %477 = vmatmul.mubr.bf16.gmra.mxu0 %v350
  %v478 = vpop.f32.mrf.mxu0
  %v479 = vadd.f32 %v386, %v478
  %v480 = vpop.f32.mrf.mxu0
  %v481 = vpop.f32.mrf.mxu0
  %v482 = vadd.f32 %v386, %v481
  %v483 = vpop.f32.mrf.mxu0
  %484 = vmatprep.mubr.bf16.mxu0 0
  %485 = vmatmul.mubr.bf16.gmra.mxu0 %v351
  %v486 = vpop.f32.mrf.mxu0
  %v487 = vadd.f32 %v386, %v486
  %v488 = vpop.f32.mrf.mxu0
  %v489 = vpop.f32.mrf.mxu0
  %v490 = vadd.f32 %v386, %v489
  %v491 = vpop.f32.mrf.mxu0
  %492 = vmatprep.mubr.bf16.mxu0 0
  %493 = vmatmul.mubr.bf16.gmra.mxu0 %v352
  %v494 = vpop.f32.mrf.mxu0
  %v495 = vadd.f32 %v386, %v494
  %v496 = vpop.f32.mrf.mxu0
  %v497 = vpop.f32.mrf.mxu0
  %v498 = vadd.f32 %v386, %v497
  %v499 = vpop.f32.mrf.mxu0
  %500 = vmatprep.mubr.bf16.mxu0 0
  %501 = vmatmul.mubr.bf16.gmra.mxu0 %v353
  %v502 = vpop.f32.mrf.mxu0
  %v503 = vadd.f32 %v386, %v502
  %v504 = vpop.f32.mrf.mxu0
  %v505 = vpop.f32.mrf.mxu0
  %v506 = vadd.f32 %v386, %v505
  %v507 = vpop.f32.mrf.mxu0
  %508 = vmatprep.mubr.bf16.mxu0 0
  %509 = vmatmul.mubr.bf16.gmra.mxu0 %v354
  %v510 = vpop.f32.mrf.mxu0
  %v511 = vadd.f32 %v386, %v510
  %v512 = vpop.f32.mrf.mxu0
  %v513 = vpop.f32.mrf.mxu0
  %v514 = vadd.f32 %v386, %v513
  %v515 = vpop.f32.mrf.mxu0
  %516 = vmatprep.mubr.bf16.mxu0 0
  %517 = vmatmul.mubr.bf16.gmra.mxu0 %v355
  %v518 = vpop.f32.mrf.mxu0
  %v519 = vadd.f32 %v386, %v518
  %v520 = vpop.f32.mrf.mxu0
  %v521 = vpop.f32.mrf.mxu0
  %v522 = vadd.f32 %v386, %v521
  %v523 = vpop.f32.mrf.mxu0
  %524 = vmatprep.mubr.bf16.mxu0 0
  %525 = vmatmul.mubr.bf16.gmra.mxu0 %v356
  %v526 = vpop.f32.mrf.mxu0
  %v527 = vadd.f32 %v386, %v526
  %v528 = vpop.f32.mrf.mxu0
  %v529 = vpop.f32.mrf.mxu0
  %v530 = vadd.f32 %v386, %v529
  %v531 = vpop.f32.mrf.mxu0
  %532 = vmatprep.mubr.bf16.mxu0 0
  %533 = vmatmul.mubr.bf16.gmra.mxu0 %v357
  %v534 = vpop.f32.mrf.mxu0
  %v535 = vadd.f32 %v386, %v534
  %v536 = vpop.f32.mrf.mxu0
  %v537 = vpop.f32.mrf.mxu0
  %v538 = vadd.f32 %v386, %v537
  %v539 = vpop.f32.mrf.mxu0
  %540 = vmatprep.mubr.bf16.mxu0 0
  %541 = vmatmul.mubr.bf16.gmra.mxu0 %v358
  %v542 = vpop.f32.mrf.mxu0
  %v543 = vadd.f32 %v386, %v542
  %v544 = vpop.f32.mrf.mxu0
  %v545 = vpop.f32.mrf.mxu0
  %v546 = vadd.f32 %v386, %v545
  %v547 = vpop.f32.mrf.mxu0
  %548 = vmatprep.mubr.bf16.mxu0 0
  %549 = vmatmul.mubr.bf16.gmra.mxu0 %v359
  %v550 = vpop.f32.mrf.mxu0
  %v551 = vadd.f32 %v386, %v550
  %v552 = vpop.f32.mrf.mxu0
  %v553 = vpop.f32.mrf.mxu0
  %v554 = vadd.f32 %v386, %v553
  %v555 = vpop.f32.mrf.mxu0
  %556 = vmatprep.mubr.bf16.mxu0 0
  %557 = vmatmul.mubr.bf16.gmra.mxu0 %v360
  %v558 = vpop.f32.mrf.mxu0
  %v559 = vadd.f32 %v386, %v558
  %v560 = vpop.f32.mrf.mxu0
  %v561 = vpop.f32.mrf.mxu0
  %v562 = vadd.f32 %v386, %v561
  %v563 = vpop.f32.mrf.mxu0
  %564 = vmatprep.mubr.bf16.mxu0 0
  %565 = vmatmul.mubr.bf16.gmra.mxu0 %v361
  %v566 = vpop.f32.mrf.mxu0
  %v567 = vadd.f32 %v386, %v566
  %v568 = vpop.f32.mrf.mxu0
  %v569 = vpop.f32.mrf.mxu0
  %v570 = vadd.f32 %v386, %v569
  %v571 = vpop.f32.mrf.mxu0
  %572 = vmatprep.mubr.bf16.mxu0 0
  %573 = vmatmul.mubr.bf16.gmra.mxu0 %v362
  %v574 = vpop.f32.mrf.mxu0
  %v575 = vadd.f32 %v386, %v574
  %v576 = vpop.f32.mrf.mxu0
  %v577 = vpop.f32.mrf.mxu0
  %v578 = vadd.f32 %v386, %v577
  %v579 = vpop.f32.mrf.mxu0
  %580 = vmatprep.mubr.bf16.mxu0 0
  %581 = vmatmul.mubr.bf16.gmra.mxu0 %v363
  %v582 = vpop.f32.mrf.mxu0
  %v583 = vadd.f32 %v386, %v582
  %v584 = vpop.f32.mrf.mxu0
  %v585 = vpop.f32.mrf.mxu0
  %v586 = vadd.f32 %v386, %v585
  %v587 = vpop.f32.mrf.mxu0
  %588 = vmatprep.mubr.bf16.mxu0 0
  %589 = vmatmul.mubr.bf16.gmra.mxu0 %v364
  %v590 = vpop.f32.mrf.mxu0
  %v591 = vadd.f32 %v386, %v590
  %v592 = vpop.f32.mrf.mxu0
  %v593 = vpop.f32.mrf.mxu0
  %v594 = vadd.f32 %v386, %v593
  %v595 = vpop.f32.mrf.mxu0
  %596 = vdwg.mxu0
  %v597 = vmax.f32 %v471, 0.0
  %v598 = vmax.f32 %v474, 0.0
  %v599 = vmax.f32 %v479, 0.0
  %v600 = vmax.f32 %v482, 0.0
  %v601 = vmax.f32 %v487, 0.0
  %v602 = vmax.f32 %v490, 0.0
  %v603 = vmax.f32 %v495, 0.0
  %v604 = vmax.f32 %v498, 0.0
  %v605 = vmax.f32 %v503, 0.0
  %v606 = vmax.f32 %v506, 0.0
  %v607 = vmax.f32 %v511, 0.0
  %v608 = vmax.f32 %v514, 0.0
  %v609 = vmax.f32 %v519, 0.0
  %v610 = vmax.f32 %v522, 0.0
  %v611 = vmax.f32 %v527, 0.0
  %v612 = vmax.f32 %v530, 0.0
  %v613 = vmax.f32 %v535, 0.0
  %v614 = vmax.f32 %v538, 0.0
  %v615 = vmax.f32 %v543, 0.0
  %v616 = vmax.f32 %v546, 0.0
  %v617 = vmax.f32 %v551, 0.0
  %v618 = vmax.f32 %v554, 0.0
  %v619 = vmax.f32 %v559, 0.0
  %v620 = vmax.f32 %v562, 0.0
  %v621 = vmax.f32 %v567, 0.0
  %v622 = vmax.f32 %v570, 0.0
  %v623 = vmax.f32 %v575, 0.0
  %v624 = vmax.f32 %v578, 0.0
  %v625 = vmax.f32 %v583, 0.0
  %v626 = vmax.f32 %v586, 0.0
  %v627 = vmax.f32 %v591, 0.0
  %v628 = vmax.f32 %v594, 0.0
  %v629 = vpack.c.bf16 %v598, %v597
  %v630 = vpack.c.bf16 %v600, %v599
  %v631 = vpack.c.bf16 %v602, %v601
  %v632 = vpack.c.bf16 %v604, %v603
  %v633 = vpack.c.bf16 %v606, %v605
  %v634 = vpack.c.bf16 %v608, %v607
  %v635 = vpack.c.bf16 %v610, %v609
  %v636 = vpack.c.bf16 %v612, %v611
  %v637 = vpack.c.bf16 %v614, %v613
  %v638 = vpack.c.bf16 %v616, %v615
  %v639 = vpack.c.bf16 %v618, %v617
  %v640 = vpack.c.bf16 %v620, %v619
  %v641 = vpack.c.bf16 %v622, %v621
  %v642 = vpack.c.bf16 %v624, %v623
  %v643 = vpack.c.bf16 %v626, %v625
  %v644 = vpack.c.bf16 %v628, %v627
  %v645 = vld [vmem:[%s5] sm:$0xf]
  %v646 = vld [vmem:[%s5 + $0x4] sm:$0xf]
  %v647 = vld [vmem:[%s5 + $0x8] sm:$0xf]
  %v648 = vld [vmem:[%s5 + $0xc] sm:$0xf]
  %v649 = vld [vmem:[%s5 + $0x10] sm:$0xf]
  %v650 = vld [vmem:[%s5 + $0x14] sm:$0xf]
  %v651 = vld [vmem:[%s5 + $0x18] sm:$0xf]
  %v652 = vld [vmem:[%s5 + $0x1c] sm:$0xf]
  %v653 = vld [vmem:[%s5 + $0x20] sm:$0xf]
  %v654 = vld [vmem:[%s5 + $0x24] sm:$0xf]
  %v655 = vld [vmem:[%s5 + $0x28] sm:$0xf]
  %v656 = vld [vmem:[%s5 + $0x2c] sm:$0xf]
  %v657 = vld [vmem:[%s5 + $0x30] sm:$0xf]
  %v658 = vld [vmem:[%s5 + $0x34] sm:$0xf]
  %v659 = vld [vmem:[%s5 + $0x38] sm:$0xf]
  %v660 = vld [vmem:[%s5 + $0x3c] sm:$0xf]
  %v661 = vld [vmem:[%s6] sm:$0x1]
  %v663 = vlaneseq
  %v664 = vshrl.u32 %v663, 7
  %v665 = vsub.s32 0, %v664
  %v666 = vrot.slane %v661, %v665
  %v684 = vunpack.c.l.b16 %v645
  %v685 = vunpack.c.l.b16 %v646
  %v686 = vunpack.c.l.b16 %v647
  %v687 = vunpack.c.l.b16 %v648
  %v688 = vunpack.c.l.b16 %v649
  %v689 = vunpack.c.l.b16 %v650
  %v690 = vunpack.c.l.b16 %v651
  %v691 = vunpack.c.l.b16 %v652
  %v692 = vunpack.c.l.b16 %v653
  %v693 = vunpack.c.l.b16 %v654
  %v694 = vunpack.c.l.b16 %v655
  %v695 = vunpack.c.l.b16 %v656
  %v696 = vunpack.c.l.b16 %v657
  %v697 = vunpack.c.l.b16 %v658
  %v698 = vunpack.c.l.b16 %v659
  %v699 = vunpack.c.l.b16 %v660
  %v700 = vpack.c.b16 %v685, %v684
  %v701 = vpack.c.b16 %v687, %v686
  %v702 = vpack.c.b16 %v689, %v688
  %v703 = vpack.c.b16 %v691, %v690
  %v704 = vpack.c.b16 %v693, %v692
  %v705 = vpack.c.b16 %v695, %v694
  %v706 = vpack.c.b16 %v697, %v696
  %v707 = vpack.c.b16 %v699, %v698
  %716 = vmatprep.subr.bf16.mxu0 0
  %717 = vmatpush1.bf16.msra.mxu0 %v707
  %718 = vmatprep.subr.bf16.mxu0 0
  %719 = vmatpush1.bf16.msra.mxu0 %v706
  %720 = vmatprep.subr.bf16.mxu0 0
  %721 = vmatpush1.bf16.msra.mxu0 %v705
  %722 = vmatprep.subr.bf16.mxu0 0
  %723 = vmatpush1.bf16.msra.mxu0 %v704
  %724 = vmatprep.subr.bf16.mxu0 0
  %725 = vmatpush1.bf16.msra.mxu0 %v703
  %726 = vmatprep.subr.bf16.mxu0 0
  %727 = vmatpush1.bf16.msra.mxu0 %v702
  %728 = vmatprep.subr.bf16.mxu0 0
  %729 = vmatpush1.bf16.msra.mxu0 %v701
  %730 = vmatprep.subr.bf16.mxu0 0
  %731 = vmatpush1.bf16.msra.mxu0 %v700
  %732 = vmatprep.subr.bf16.mxu0 0
  %733 = vmatpush2.bf16.msra.mxu0 0
  %734 = vmatprep.subr.bf16.mxu0 0
  %735 = vmatpush2.bf16.msra.mxu0 0
  %736 = vmatprep.subr.bf16.mxu0 0
  %737 = vmatpush2.bf16.msra.mxu0 0
  %738 = vmatprep.subr.bf16.mxu0 0
  %739 = vmatpush2.bf16.msra.mxu0 0
  %740 = vmatprep.subr.bf16.mxu0 0
  %741 = vmatpush2.bf16.msra.mxu0 0
  %742 = vmatprep.subr.bf16.mxu0 0
  %743 = vmatpush2.bf16.msra.mxu0 0
  %744 = vmatprep.subr.bf16.mxu0 0
  %745 = vmatpush2.bf16.msra.mxu0 0
  %746 = vmatprep.subr.bf16.mxu0 0
  %747 = vmatpush2.bf16.msra.mxu0 0
  %748 = vmatprep.mubr.bf16.mxu0 0
  %749 = vmatmul.mubr.bf16.gmra.mxu0 %v629
  %v750 = vpop.f32.mrf.mxu0
  %v751 = vadd.f32 %v666, %v750
  %v752 = vpop.f32.mrf.mxu0
  %v753 = vpop.f32.mrf.mxu0
  %v754 = vadd.f32 %v666, %v753
  %v755 = vpop.f32.mrf.mxu0
  %756 = vmatprep.mubr.bf16.mxu0 0
  %757 = vmatmul.mubr.bf16.gmra.mxu0 %v630
  %v758 = vpop.f32.mrf.mxu0
  %v759 = vadd.f32 %v666, %v758
  %v760 = vpop.f32.mrf.mxu0
  %v761 = vpop.f32.mrf.mxu0
  %v762 = vadd.f32 %v666, %v761
  %v763 = vpop.f32.mrf.mxu0
  %764 = vmatprep.mubr.bf16.mxu0 0
  %765 = vmatmul.mubr.bf16.gmra.mxu0 %v631
  %v766 = vpop.f32.mrf.mxu0
  %v767 = vadd.f32 %v666, %v766
  %v768 = vpop.f32.mrf.mxu0
  %v769 = vpop.f32.mrf.mxu0
  %v770 = vadd.f32 %v666, %v769
  %v771 = vpop.f32.mrf.mxu0
  %772 = vmatprep.mubr.bf16.mxu0 0
  %773 = vmatmul.mubr.bf16.gmra.mxu0 %v632
  %v774 = vpop.f32.mrf.mxu0
  %v775 = vadd.f32 %v666, %v774
  %v776 = vpop.f32.mrf.mxu0
  %v777 = vpop.f32.mrf.mxu0
  %v778 = vadd.f32 %v666, %v777
  %v779 = vpop.f32.mrf.mxu0
  %780 = vmatprep.mubr.bf16.mxu0 0
  %781 = vmatmul.mubr.bf16.gmra.mxu0 %v633
  %v782 = vpop.f32.mrf.mxu0
  %v783 = vadd.f32 %v666, %v782
  %v784 = vpop.f32.mrf.mxu0
  %v785 = vpop.f32.mrf.mxu0
  %v786 = vadd.f32 %v666, %v785
  %v787 = vpop.f32.mrf.mxu0
  %788 = vmatprep.mubr.bf16.mxu0 0
  %789 = vmatmul.mubr.bf16.gmra.mxu0 %v634
  %v790 = vpop.f32.mrf.mxu0
  %v791 = vadd.f32 %v666, %v790
  %v792 = vpop.f32.mrf.mxu0
  %v793 = vpop.f32.mrf.mxu0
  %v794 = vadd.f32 %v666, %v793
  %v795 = vpop.f32.mrf.mxu0
  %796 = vmatprep.mubr.bf16.mxu0 0
  %797 = vmatmul.mubr.bf16.gmra.mxu0 %v635
  %v798 = vpop.f32.mrf.mxu0
  %v799 = vadd.f32 %v666, %v798
  %v800 = vpop.f32.mrf.mxu0
  %v801 = vpop.f32.mrf.mxu0
  %v802 = vadd.f32 %v666, %v801
  %v803 = vpop.f32.mrf.mxu0
  %804 = vmatprep.mubr.bf16.mxu0 0
  %805 = vmatmul.mubr.bf16.gmra.mxu0 %v636
  %v806 = vpop.f32.mrf.mxu0
  %v807 = vadd.f32 %v666, %v806
  %v808 = vpop.f32.mrf.mxu0
  %v809 = vpop.f32.mrf.mxu0
  %v810 = vadd.f32 %v666, %v809
  %v811 = vpop.f32.mrf.mxu0
  %812 = vmatprep.mubr.bf16.mxu0 0
  %813 = vmatmul.mubr.bf16.gmra.mxu0 %v637
  %v814 = vpop.f32.mrf.mxu0
  %v815 = vadd.f32 %v666, %v814
  %v816 = vpop.f32.mrf.mxu0
  %v817 = vpop.f32.mrf.mxu0
  %v818 = vadd.f32 %v666, %v817
  %v819 = vpop.f32.mrf.mxu0
  %820 = vmatprep.mubr.bf16.mxu0 0
  %821 = vmatmul.mubr.bf16.gmra.mxu0 %v638
  %v822 = vpop.f32.mrf.mxu0
  %v823 = vadd.f32 %v666, %v822
  %v824 = vpop.f32.mrf.mxu0
  %v825 = vpop.f32.mrf.mxu0
  %v826 = vadd.f32 %v666, %v825
  %v827 = vpop.f32.mrf.mxu0
  %828 = vmatprep.mubr.bf16.mxu0 0
  %829 = vmatmul.mubr.bf16.gmra.mxu0 %v639
  %v830 = vpop.f32.mrf.mxu0
  %v831 = vadd.f32 %v666, %v830
  %v832 = vpop.f32.mrf.mxu0
  %v833 = vpop.f32.mrf.mxu0
  %v834 = vadd.f32 %v666, %v833
  %v835 = vpop.f32.mrf.mxu0
  %836 = vmatprep.mubr.bf16.mxu0 0
  %837 = vmatmul.mubr.bf16.gmra.mxu0 %v640
  %v838 = vpop.f32.mrf.mxu0
  %v839 = vadd.f32 %v666, %v838
  %v840 = vpop.f32.mrf.mxu0
  %v841 = vpop.f32.mrf.mxu0
  %v842 = vadd.f32 %v666, %v841
  %v843 = vpop.f32.mrf.mxu0
  %844 = vmatprep.mubr.bf16.mxu0 0
  %845 = vmatmul.mubr.bf16.gmra.mxu0 %v641
  %v846 = vpop.f32.mrf.mxu0
  %v847 = vadd.f32 %v666, %v846
  %v848 = vpop.f32.mrf.mxu0
  %v849 = vpop.f32.mrf.mxu0
  %v850 = vadd.f32 %v666, %v849
  %v851 = vpop.f32.mrf.mxu0
  %852 = vmatprep.mubr.bf16.mxu0 0
  %853 = vmatmul.mubr.bf16.gmra.mxu0 %v642
  %v854 = vpop.f32.mrf.mxu0
  %v855 = vadd.f32 %v666, %v854
  %v856 = vpop.f32.mrf.mxu0
  %v857 = vpop.f32.mrf.mxu0
  %v858 = vadd.f32 %v666, %v857
  %v859 = vpop.f32.mrf.mxu0
  %860 = vmatprep.mubr.bf16.mxu0 0
  %861 = vmatmul.mubr.bf16.gmra.mxu0 %v643
  %v862 = vpop.f32.mrf.mxu0
  %v863 = vadd.f32 %v666, %v862
  %v864 = vpop.f32.mrf.mxu0
  %v865 = vpop.f32.mrf.mxu0
  %v866 = vadd.f32 %v666, %v865
  %v867 = vpop.f32.mrf.mxu0
  %868 = vmatprep.mubr.bf16.mxu0 0
  %869 = vmatmul.mubr.bf16.gmra.mxu0 %v644
  %v870 = vpop.f32.mrf.mxu0
  %v871 = vadd.f32 %v666, %v870
  %v872 = vpop.f32.mrf.mxu0
  %v873 = vpop.f32.mrf.mxu0
  %v874 = vadd.f32 %v666, %v873
  %v875 = vpop.f32.mrf.mxu0
  %876 = vdwg.mxu0
  %v877 = vmax.f32 %v751, 0.0
  %v878 = vmax.f32 %v754, 0.0
  %v879 = vmax.f32 %v759, 0.0
  %v880 = vmax.f32 %v762, 0.0
  %v881 = vmax.f32 %v767, 0.0
  %v882 = vmax.f32 %v770, 0.0
  %v883 = vmax.f32 %v775, 0.0
  %v884 = vmax.f32 %v778, 0.0
  %v885 = vmax.f32 %v783, 0.0
  %v886 = vmax.f32 %v786, 0.0
  %v887 = vmax.f32 %v791, 0.0
  %v888 = vmax.f32 %v794, 0.0
  %v889 = vmax.f32 %v799, 0.0
  %v890 = vmax.f32 %v802, 0.0
  %v891 = vmax.f32 %v807, 0.0
  %v892 = vmax.f32 %v810, 0.0
  %v893 = vmax.f32 %v815, 0.0
  %v894 = vmax.f32 %v818, 0.0
  %v895 = vmax.f32 %v823, 0.0
  %v896 = vmax.f32 %v826, 0.0
  %v897 = vmax.f32 %v831, 0.0
  %v898 = vmax.f32 %v834, 0.0
  %v899 = vmax.f32 %v839, 0.0
  %v900 = vmax.f32 %v842, 0.0
  %v901 = vmax.f32 %v847, 0.0
  %v902 = vmax.f32 %v850, 0.0
  %v903 = vmax.f32 %v855, 0.0
  %v904 = vmax.f32 %v858, 0.0
  %v905 = vmax.f32 %v863, 0.0
  %v906 = vmax.f32 %v866, 0.0
  %v907 = vmax.f32 %v871, 0.0
  %v908 = vmax.f32 %v874, 0.0
  %v909 = vpack.c.bf16 %v878, %v877
  %v910 = vpack.c.bf16 %v880, %v879
  %v911 = vpack.c.bf16 %v882, %v881
  %v912 = vpack.c.bf16 %v884, %v883
  %v913 = vpack.c.bf16 %v886, %v885
  %v914 = vpack.c.bf16 %v888, %v887
  %v915 = vpack.c.bf16 %v890, %v889
  %v916 = vpack.c.bf16 %v892, %v891
  %v917 = vpack.c.bf16 %v894, %v893
  %v918 = vpack.c.bf16 %v896, %v895
  %v919 = vpack.c.bf16 %v898, %v897
  %v920 = vpack.c.bf16 %v900, %v899
  %v921 = vpack.c.bf16 %v902, %v901
  %v922 = vpack.c.bf16 %v904, %v903
  %v923 = vpack.c.bf16 %v906, %v905
  %v924 = vpack.c.bf16 %v908, %v907
  %v925 = vld [vmem:[%s7] sm:$0xf]
  %v926 = vld [vmem:[%s7 + $0x4] sm:$0xf]
  %v927 = vld [vmem:[%s7 + $0x8] sm:$0xf]
  %v928 = vld [vmem:[%s7 + $0xc] sm:$0xf]
  %v929 = vld [vmem:[%s7 + $0x10] sm:$0xf]
  %v930 = vld [vmem:[%s7 + $0x14] sm:$0xf]
  %v931 = vld [vmem:[%s7 + $0x18] sm:$0xf]
  %v932 = vld [vmem:[%s7 + $0x1c] sm:$0xf]
  %v933 = vld [vmem:[%s7 + $0x20] sm:$0xf]
  %v934 = vld [vmem:[%s7 + $0x24] sm:$0xf]
  %v935 = vld [vmem:[%s7 + $0x28] sm:$0xf]
  %v936 = vld [vmem:[%s7 + $0x2c] sm:$0xf]
  %v937 = vld [vmem:[%s7 + $0x30] sm:$0xf]
  %v938 = vld [vmem:[%s7 + $0x34] sm:$0xf]
  %v939 = vld [vmem:[%s7 + $0x38] sm:$0xf]
  %v940 = vld [vmem:[%s7 + $0x3c] sm:$0xf]
  %v941 = vld [vmem:[%s8] sm:$0x1]
  %v943 = vlaneseq
  %v944 = vshrl.u32 %v943, 7
  %v945 = vsub.s32 0, %v944
  %v946 = vrot.slane %v941, %v945
  %v964 = vunpack.c.l.b16 %v925
  %v965 = vunpack.c.l.b16 %v926
  %v966 = vunpack.c.l.b16 %v927
  %v967 = vunpack.c.l.b16 %v928
  %v968 = vunpack.c.l.b16 %v929
  %v969 = vunpack.c.l.b16 %v930
  %v970 = vunpack.c.l.b16 %v931
  %v971 = vunpack.c.l.b16 %v932
  %v972 = vunpack.c.l.b16 %v933
  %v973 = vunpack.c.l.b16 %v934
  %v974 = vunpack.c.l.b16 %v935
  %v975 = vunpack.c.l.b16 %v936
  %v976 = vunpack.c.l.b16 %v937
  %v977 = vunpack.c.l.b16 %v938
  %v978 = vunpack.c.l.b16 %v939
  %v979 = vunpack.c.l.b16 %v940
  %v980 = vpack.c.b16 %v965, %v964
  %v981 = vpack.c.b16 %v967, %v966
  %v982 = vpack.c.b16 %v969, %v968
  %v983 = vpack.c.b16 %v971, %v970
  %v984 = vpack.c.b16 %v973, %v972
  %v985 = vpack.c.b16 %v975, %v974
  %v986 = vpack.c.b16 %v977, %v976
  %v987 = vpack.c.b16 %v979, %v978
  %996 = vmatprep.subr.bf16.mxu0 0
  %997 = vmatpush1.bf16.msra.mxu0 %v987
  %998 = vmatprep.subr.bf16.mxu0 0
  %999 = vmatpush1.bf16.msra.mxu0 %v986
  %1000 = vmatprep.subr.bf16.mxu0 0
  %1001 = vmatpush1.bf16.msra.mxu0 %v985
  %1002 = vmatprep.subr.bf16.mxu0 0
  %1003 = vmatpush1.bf16.msra.mxu0 %v984
  %1004 = vmatprep.subr.bf16.mxu0 0
  %1005 = vmatpush1.bf16.msra.mxu0 %v983
  %1006 = vmatprep.subr.bf16.mxu0 0
  %1007 = vmatpush1.bf16.msra.mxu0 %v982
  %1008 = vmatprep.subr.bf16.mxu0 0
  %1009 = vmatpush1.bf16.msra.mxu0 %v981
  %1010 = vmatprep.subr.bf16.mxu0 0
  %1011 = vmatpush1.bf16.msra.mxu0 %v980
  %1012 = vmatprep.subr.bf16.mxu0 0
  %1013 = vmatpush2.bf16.msra.mxu0 0
  %1014 = vmatprep.subr.bf16.mxu0 0
  %1015 = vmatpush2.bf16.msra.mxu0 0
  %1016 = vmatprep.subr.bf16.mxu0 0
  %1017 = vmatpush2.bf16.msra.mxu0 0
  %1018 = vmatprep.subr.bf16.mxu0 0
  %1019 = vmatpush2.bf16.msra.mxu0 0
  %1020 = vmatprep.subr.bf16.mxu0 0
  %1021 = vmatpush2.bf16.msra.mxu0 0
  %1022 = vmatprep.subr.bf16.mxu0 0
  %1023 = vmatpush2.bf16.msra.mxu0 0
  %1024 = vmatprep.subr.bf16.mxu0 0
  %1025 = vmatpush2.bf16.msra.mxu0 0
  %1026 = vmatprep.subr.bf16.mxu0 0
  %1027 = vmatpush2.bf16.msra.mxu0 0
  %1028 = vmatprep.mubr.bf16.mxu0 0
  %1029 = vmatmul.mubr.bf16.gmra.mxu0 %v909
  %v1030 = vpop.f32.mrf.mxu0
  %v1031 = vadd.f32 %v946, %v1030
  %v1032 = vpop.f32.mrf.mxu0
  %v1033 = vpop.f32.mrf.mxu0
  %v1034 = vadd.f32 %v946, %v1033
  %v1035 = vpop.f32.mrf.mxu0
  %1036 = vmatprep.mubr.bf16.mxu0 0
  %1037 = vmatmul.mubr.bf16.gmra.mxu0 %v910
  %v1038 = vpop.f32.mrf.mxu0
  %v1039 = vadd.f32 %v946, %v1038
  %v1040 = vpop.f32.mrf.mxu0
  %v1041 = vpop.f32.mrf.mxu0
  %v1042 = vadd.f32 %v946, %v1041
  %v1043 = vpop.f32.mrf.mxu0
  %1044 = vmatprep.mubr.bf16.mxu0 0
  %1045 = vmatmul.mubr.bf16.gmra.mxu0 %v911
  %v1046 = vpop.f32.mrf.mxu0
  %v1047 = vadd.f32 %v946, %v1046
  %v1048 = vpop.f32.mrf.mxu0
  %v1049 = vpop.f32.mrf.mxu0
  %v1050 = vadd.f32 %v946, %v1049
  %v1051 = vpop.f32.mrf.mxu0
  %1052 = vmatprep.mubr.bf16.mxu0 0
  %1053 = vmatmul.mubr.bf16.gmra.mxu0 %v912
  %v1054 = vpop.f32.mrf.mxu0
  %v1055 = vadd.f32 %v946, %v1054
  %v1056 = vpop.f32.mrf.mxu0
  %v1057 = vpop.f32.mrf.mxu0
  %v1058 = vadd.f32 %v946, %v1057
  %v1059 = vpop.f32.mrf.mxu0
  %1060 = vmatprep.mubr.bf16.mxu0 0
  %1061 = vmatmul.mubr.bf16.gmra.mxu0 %v913
  %v1062 = vpop.f32.mrf.mxu0
  %v1063 = vadd.f32 %v946, %v1062
  %v1064 = vpop.f32.mrf.mxu0
  %v1065 = vpop.f32.mrf.mxu0
  %v1066 = vadd.f32 %v946, %v1065
  %v1067 = vpop.f32.mrf.mxu0
  %1068 = vmatprep.mubr.bf16.mxu0 0
  %1069 = vmatmul.mubr.bf16.gmra.mxu0 %v914
  %v1070 = vpop.f32.mrf.mxu0
  %v1071 = vadd.f32 %v946, %v1070
  %v1072 = vpop.f32.mrf.mxu0
  %v1073 = vpop.f32.mrf.mxu0
  %v1074 = vadd.f32 %v946, %v1073
  %v1075 = vpop.f32.mrf.mxu0
  %1076 = vmatprep.mubr.bf16.mxu0 0
  %1077 = vmatmul.mubr.bf16.gmra.mxu0 %v915
  %v1078 = vpop.f32.mrf.mxu0
  %v1079 = vadd.f32 %v946, %v1078
  %v1080 = vpop.f32.mrf.mxu0
  %v1081 = vpop.f32.mrf.mxu0
  %v1082 = vadd.f32 %v946, %v1081
  %v1083 = vpop.f32.mrf.mxu0
  %1084 = vmatprep.mubr.bf16.mxu0 0
  %1085 = vmatmul.mubr.bf16.gmra.mxu0 %v916
  %v1086 = vpop.f32.mrf.mxu0
  %v1087 = vadd.f32 %v946, %v1086
  %v1088 = vpop.f32.mrf.mxu0
  %v1089 = vpop.f32.mrf.mxu0
  %v1090 = vadd.f32 %v946, %v1089
  %v1091 = vpop.f32.mrf.mxu0
  %1092 = vmatprep.mubr.bf16.mxu0 0
  %1093 = vmatmul.mubr.bf16.gmra.mxu0 %v917
  %v1094 = vpop.f32.mrf.mxu0
  %v1095 = vadd.f32 %v946, %v1094
  %v1096 = vpop.f32.mrf.mxu0
  %v1097 = vpop.f32.mrf.mxu0
  %v1098 = vadd.f32 %v946, %v1097
  %v1099 = vpop.f32.mrf.mxu0
  %1100 = vmatprep.mubr.bf16.mxu0 0
  %1101 = vmatmul.mubr.bf16.gmra.mxu0 %v918
  %v1102 = vpop.f32.mrf.mxu0
  %v1103 = vadd.f32 %v946, %v1102
  %v1104 = vpop.f32.mrf.mxu0
  %v1105 = vpop.f32.mrf.mxu0
  %v1106 = vadd.f32 %v946, %v1105
  %v1107 = vpop.f32.mrf.mxu0
  %1108 = vmatprep.mubr.bf16.mxu0 0
  %1109 = vmatmul.mubr.bf16.gmra.mxu0 %v919
  %v1110 = vpop.f32.mrf.mxu0
  %v1111 = vadd.f32 %v946, %v1110
  %v1112 = vpop.f32.mrf.mxu0
  %v1113 = vpop.f32.mrf.mxu0
  %v1114 = vadd.f32 %v946, %v1113
  %v1115 = vpop.f32.mrf.mxu0
  %1116 = vmatprep.mubr.bf16.mxu0 0
  %1117 = vmatmul.mubr.bf16.gmra.mxu0 %v920
  %v1118 = vpop.f32.mrf.mxu0
  %v1119 = vadd.f32 %v946, %v1118
  %v1120 = vpop.f32.mrf.mxu0
  %v1121 = vpop.f32.mrf.mxu0
  %v1122 = vadd.f32 %v946, %v1121
  %v1123 = vpop.f32.mrf.mxu0
  %1124 = vmatprep.mubr.bf16.mxu0 0
  %1125 = vmatmul.mubr.bf16.gmra.mxu0 %v921
  %v1126 = vpop.f32.mrf.mxu0
  %v1127 = vadd.f32 %v946, %v1126
  %v1128 = vpop.f32.mrf.mxu0
  %v1129 = vpop.f32.mrf.mxu0
  %v1130 = vadd.f32 %v946, %v1129
  %v1131 = vpop.f32.mrf.mxu0
  %1132 = vmatprep.mubr.bf16.mxu0 0
  %1133 = vmatmul.mubr.bf16.gmra.mxu0 %v922
  %v1134 = vpop.f32.mrf.mxu0
  %v1135 = vadd.f32 %v946, %v1134
  %v1136 = vpop.f32.mrf.mxu0
  %v1137 = vpop.f32.mrf.mxu0
  %v1138 = vadd.f32 %v946, %v1137
  %v1139 = vpop.f32.mrf.mxu0
  %1140 = vmatprep.mubr.bf16.mxu0 0
  %1141 = vmatmul.mubr.bf16.gmra.mxu0 %v923
  %v1142 = vpop.f32.mrf.mxu0
  %v1143 = vadd.f32 %v946, %v1142
  %v1144 = vpop.f32.mrf.mxu0
  %v1145 = vpop.f32.mrf.mxu0
  %v1146 = vadd.f32 %v946, %v1145
  %v1147 = vpop.f32.mrf.mxu0
  %1148 = vmatprep.mubr.bf16.mxu0 0
  %1149 = vmatmul.mubr.bf16.gmra.mxu0 %v924
  %v1150 = vpop.f32.mrf.mxu0
  %v1151 = vadd.f32 %v946, %v1150
  %v1152 = vpop.f32.mrf.mxu0
  %v1153 = vpop.f32.mrf.mxu0
  %v1154 = vadd.f32 %v946, %v1153
  %v1155 = vpop.f32.mrf.mxu0
  %1156 = vdwg.mxu0
  %vm1157 = vcmask 15360
  %1158 = vst.msk [vmem:[%s9] sm:$0xff] %vm1157, %v1031
  %1159 = vst.msk [vmem:[%s9 + $0x8] sm:$0xff] %vm1157, %v1034
  %1160 = vst.msk [vmem:[%s9 + $0x10] sm:$0xff] %vm1157, %v1039
  %1161 = vst.msk [vmem:[%s9 + $0x18] sm:$0xff] %vm1157, %v1042
  %1162 = vst.msk [vmem:[%s9 + $0x20] sm:$0xff] %vm1157, %v1047
  %1163 = vst.msk [vmem:[%s9 + $0x28] sm:$0xff] %vm1157, %v1050
  %1164 = vst.msk [vmem:[%s9 + $0x30] sm:$0xff] %vm1157, %v1055
  %1165 = vst.msk [vmem:[%s9 + $0x38] sm:$0xff] %vm1157, %v1058
  %1166 = vst.msk [vmem:[%s9 + $0x40] sm:$0xff] %vm1157, %v1063
  %1167 = vst.msk [vmem:[%s9 + $0x48] sm:$0xff] %vm1157, %v1066
  %1168 = vst.msk [vmem:[%s9 + $0x50] sm:$0xff] %vm1157, %v1071
  %1169 = vst.msk [vmem:[%s9 + $0x58] sm:$0xff] %vm1157, %v1074
  %1170 = vst.msk [vmem:[%s9 + $0x60] sm:$0xff] %vm1157, %v1079
  %1171 = vst.msk [vmem:[%s9 + $0x68] sm:$0xff] %vm1157, %v1082
  %1172 = vst.msk [vmem:[%s9 + $0x70] sm:$0xff] %vm1157, %v1087
  %1173 = vst.msk [vmem:[%s9 + $0x78] sm:$0xff] %vm1157, %v1090
  %1174 = vst.msk [vmem:[%s9 + $0x80] sm:$0xff] %vm1157, %v1095
  %1175 = vst.msk [vmem:[%s9 + $0x88] sm:$0xff] %vm1157, %v1098
  %1176 = vst.msk [vmem:[%s9 + $0x90] sm:$0xff] %vm1157, %v1103
  %1177 = vst.msk [vmem:[%s9 + $0x98] sm:$0xff] %vm1157, %v1106
  %1178 = vst.msk [vmem:[%s9 + $0xa0] sm:$0xff] %vm1157, %v1111
  %1179 = vst.msk [vmem:[%s9 + $0xa8] sm:$0xff] %vm1157, %v1114
  %1180 = vst.msk [vmem:[%s9 + $0xb0] sm:$0xff] %vm1157, %v1119
  %1181 = vst.msk [vmem:[%s9 + $0xb8] sm:$0xff] %vm1157, %v1122
  %1182 = vst.msk [vmem:[%s9 + $0xc0] sm:$0xff] %vm1157, %v1127
  %1183 = vst.msk [vmem:[%s9 + $0xc8] sm:$0xff] %vm1157, %v1130
  %1184 = vst.msk [vmem:[%s9 + $0xd0] sm:$0xff] %vm1157, %v1135
  %1185 = vst.msk [vmem:[%s9 + $0xd8] sm:$0xff] %vm1157, %v1138
  %1186 = vst.msk [vmem:[%s9 + $0xe0] sm:$0xff] %vm1157, %v1143
  %1187 = vst.msk [vmem:[%s9 + $0xe8] sm:$0xff] %vm1157, %v1146
  %1188 = vst.msk [vmem:[%s9 + $0xf0] sm:$0xff] %vm1157, %v1151
  %1189 = vst.msk [vmem:[%s9 + $0xf8] sm:$0xff] %vm1157, %v1154
  // Predicated region
  $region38: #{xvectornet_forward.1} parent=0 // pred_check
    _
  $region39: #{xvectornet_forward.1} parent=0 // pred_check_branch
    %1191 = sbr.rel (0) target = $region41
  $region40: #{xvectornet_forward.1} parent=0 // pred_region
    _
  $region41: #{xvectornet_forward.1} parent=0 // pred_fallthru
    _
  // Predicated region
  $region42: #{xvectornet_forward.1} parent=0 // pred_check
    _
  $region43: #{xvectornet_forward.1} parent=0 // pred_check_branch
    %1193 = sbr.rel (0) target = $region45
  $region44: #{xvectornet_forward.1} parent=0 // pred_region
    _
  $region45: #{xvectornet_forward.1} parent=0 // pred_fallthru
    _

</llo_original>
